<compile_context>
chip_gen: v5e
topology: v5e:2x2
jax: 0.10.0
libtpu: 0.0.40
codegen_flags: <defaults>
</compile_context>

<pallas_src>
import functools
import math

import jax
import jax.numpy as jnp
from jax.experimental import pallas as pl
from jax.experimental.pallas import tpu as pltpu

LANES = 128
MAX_BLOCK_ROWS = 4096  # 4096 x 128 x 4B = 2 MiB f32 tile


def _mix32(x):
    """lowbias32 integer mixer (full-avalanche 32-bit hash), uint32 in/out."""
    x = x ^ (x >> jnp.uint32(16))
    x = x * jnp.uint32(0x7FEB352D)
    x = x ^ (x >> jnp.uint32(15))
    x = x * jnp.uint32(0x846CA68B)
    x = x ^ (x >> jnp.uint32(16))
    return x


def _gaussian_noise_kernel(seed_ref, sigma_ref, img_ref, out_ref):
    """out = img + sigma * N(0,1) on the current (block_rows, LANES) tile.

    seed_ref, sigma_ref : SMEM scalars, shape (1,)
    img_ref, out_ref    : VMEM tiles (block_rows, LANES), input dtype
    """
    block_rows, lanes = img_ref.shape
    half = block_rows // 2  # block_rows is guaranteed even by the wrapper

    seed = seed_ref[0].astype(jnp.uint32)
    pid = pl.program_id(0)

    # Unique linear index per (u1, u2) pair across the whole grid.
    row = jax.lax.broadcasted_iota(jnp.int32, (half, lanes), 0)
    col = jax.lax.broadcasted_iota(jnp.int32, (half, lanes), 1)
    ctr = ((pid * half + row) * lanes + col).astype(jnp.uint32)

    # Two decorrelated 32-bit streams per pair.
    b1 = _mix32(ctr ^ seed)
    b2 = _mix32(ctr ^ seed ^ jnp.uint32(0x9E3779B9))

    # Top 24 bits -> uniform in [0, 1).
    inv24 = jnp.float32(1.0 / (1 << 24))
    u1 = (b1 >> jnp.uint32(8)).astype(jnp.int32).astype(jnp.float32) * inv24
    u2 = (b2 >> jnp.uint32(8)).astype(jnp.int32).astype(jnp.float32) * inv24
    u1 = jnp.maximum(u1, jnp.float32(1e-7))  # avoid log(0)

    # Box-Muller: one (u1, u2) pair -> two independent standard normals.
    r = jnp.sqrt(jnp.float32(-2.0) * jnp.log(u1))
    theta = jnp.float32(2.0 * math.pi) * u2
    n_top = r * jnp.cos(theta)
    n_bot = r * jnp.sin(theta)
    noise = jnp.concatenate([n_top, n_bot], axis=0)  # (block_rows, lanes)

    sigma = sigma_ref[0]
    x = img_ref[...].astype(jnp.float32)
    out_ref[...] = (x + sigma * noise).astype(out_ref.dtype)


@functools.partial(jax.jit, static_argnames=("sigma_min", "sigma_max"))
def gaussian_noise(img, key, sigma_min=0.1, sigma_max=1.0):
    """JAX/Pallas equivalent of GaussianNoise.forward (img: NCHW, any float dtype)."""
    assert 0.0 <= sigma_min <= sigma_max
    k_sigma, k_seed = jax.random.split(key)

    # sigma = torch.empty(1).uniform_(sigma_min, sigma_max).item()
    sigma = jax.random.uniform(
        k_sigma, (1,), jnp.float32, minval=sigma_min, maxval=sigma_max
    )
    # Base seed for the in-kernel counter hash (stands in for torch.randn_like).
    seed = jax.random.randint(k_seed, (1,), 0, 2**31 - 1, dtype=jnp.int32)

    orig_shape = img.shape
    orig_dtype = img.dtype
    total = math.prod(orig_shape)

    # Flatten to a lane-dense (rows, 128) slab; rows is kept even so the kernel
    # can split each tile in half for the cos/sin Box-Muller reuse.  Padding is
    # only materialized when total is not already a multiple of 256 (images
    # normally are, so the reshape is free).
    unit = 2 * LANES
    padded_total = ((total + unit - 1) // unit) * unit
    flat = img.reshape(-1)
    if padded_total != total:
        flat = jnp.pad(flat, (0, padded_total - total))
    rows = padded_total // LANES
    flat2d = flat.reshape(rows, LANES)

    # Largest tile that fits comfortably in every generation's scoped VMEM:
    # (4096, 128) f32 = 2 MiB; in+out double-buffered = 8 MiB.
    block_rows = rows if rows <= MAX_BLOCK_ROWS else MAX_BLOCK_ROWS
    grid = (pl.cdiv(rows, block_rows),)

    out2d = pl.pallas_call(
        _gaussian_noise_kernel,
        out_shape=jax.ShapeDtypeStruct((rows, LANES), orig_dtype),
        grid=grid,
        in_specs=[
            pl.BlockSpec(memory_space=pltpu.MemorySpace.SMEM),       # seed
            pl.BlockSpec(memory_space=pltpu.MemorySpace.SMEM),       # sigma
            pl.BlockSpec((block_rows, LANES), lambda i: (i, 0)),     # img tile
        ],
        out_specs=pl.BlockSpec((block_rows, LANES), lambda i: (i, 0)),
        compiler_params=pltpu.CompilerParams(
            # Counter-based (stateless) PRNG -> grid steps are independent;
            # "parallel" lets v7x shard across its two TensorCores.
            dimension_semantics=("parallel",),
        ),
    )(seed, sigma, flat2d)

    out = out2d.reshape(-1)
    if padded_total != total:
        out = out[:total]
    return out.reshape(orig_shape)


if __name__ == "__main__":
    key = jax.random.PRNGKey(0)
    k_img, k_noise = jax.random.split(key)

    # NCHW image, small shapes: batch=2, channels=4, spatial=16x16.
    x = jax.random.uniform(k_img, (2, 4, 16, 16), jnp.float32)

    y = gaussian_noise(x, k_noise, sigma_min=0.1, sigma_max=1.0)
    y = jax.block_until_ready(y)

    # Basic sanity checks: shape/dtype preserved, noise actually added, finite.
    assert y.shape == x.shape and y.dtype == x.dtype
    assert bool(jnp.any(y != x))
    assert bool(jnp.all(jnp.isfinite(y)))

    print("KERNEL_OK")
</pallas_src>

<mosaic_0001>
module attributes {stable_mosaic.version = 11 : i64} {
  func.func @_gaussian_noise_kernel(%arg0: i32, %arg1: memref<1xi32, #tpu.memory_space<smem>>, %arg2: memref<1xf32, #tpu.memory_space<smem>>, %arg3: memref<16x128xf32, #tpu.memory_space<vmem>>, %arg4: memref<16x128xf32, #tpu.memory_space<vmem>>) attributes {dimension_semantics = [#tpu.dimension_semantics<parallel>], iteration_bounds = array<i64: 1>, scalar_prefetch = 0 : i64, scratch_operands = 0 : i64, tpu.core_type = #tpu.core_type<tc>, window_params = [{transform_indices = @transform_0, window_bounds = array<i64: 1>}, {transform_indices = @transform_1, window_bounds = array<i64: 1>}, {transform_indices = @transform_2, window_bounds = array<i64: 16, 128>}, {transform_indices = @transform_3, window_bounds = array<i64: 16, 128>}]} {
    %c0 = arith.constant 0 : index
    %0 = memref.load %arg1[%c0] : memref<1xi32, #tpu.memory_space<smem>>
    %1 = tpu.iota {dimensions = array<i32: 0>} : vector<8x128xi32>
    %2 = tpu.iota {dimensions = array<i32: 1>} : vector<8x128xi32>
    %c8_i32 = arith.constant 8 : i32
    %3 = arith.muli %arg0, %c8_i32 : i32
    %4 = vector.broadcast %3 : i32 to vector<8x128xi32>
    %5 = arith.addi %4, %1 : vector<8x128xi32>
    %c128_i32 = arith.constant 128 : i32
    %6 = vector.broadcast %c128_i32 : i32 to vector<8x128xi32>
    %7 = arith.muli %5, %6 : vector<8x128xi32>
    %8 = arith.addi %7, %2 : vector<8x128xi32>
    %9 = vector.broadcast %0 : i32 to vector<8x128xi32>
    %10 = arith.xori %8, %9 : vector<8x128xi32>
    %c16_i32 = arith.constant 16 : i32
    %11 = vector.broadcast %c16_i32 : i32 to vector<8x128xi32>
    %12 = arith.shrui %10, %11 : vector<8x128xi32>
    %13 = arith.xori %10, %12 : vector<8x128xi32>
    %c2146121005_i32 = arith.constant 2146121005 : i32
    %14 = vector.broadcast %c2146121005_i32 : i32 to vector<8x128xi32>
    %15 = arith.muli %13, %14 : vector<8x128xi32>
    %c15_i32 = arith.constant 15 : i32
    %16 = vector.broadcast %c15_i32 : i32 to vector<8x128xi32>
    %17 = arith.shrui %15, %16 : vector<8x128xi32>
    %18 = arith.xori %15, %17 : vector<8x128xi32>
    %c-2073254261_i32 = arith.constant -2073254261 : i32
    %19 = vector.broadcast %c-2073254261_i32 : i32 to vector<8x128xi32>
    %20 = arith.muli %18, %19 : vector<8x128xi32>
    %c16_i32_0 = arith.constant 16 : i32
    %21 = vector.broadcast %c16_i32_0 : i32 to vector<8x128xi32>
    %22 = arith.shrui %20, %21 : vector<8x128xi32>
    %23 = arith.xori %20, %22 : vector<8x128xi32>
    %24 = vector.broadcast %0 : i32 to vector<8x128xi32>
    %25 = arith.xori %8, %24 : vector<8x128xi32>
    %c-1640531527_i32 = arith.constant -1640531527 : i32
    %26 = vector.broadcast %c-1640531527_i32 : i32 to vector<8x128xi32>
    %27 = arith.xori %25, %26 : vector<8x128xi32>
    %c16_i32_1 = arith.constant 16 : i32
    %28 = vector.broadcast %c16_i32_1 : i32 to vector<8x128xi32>
    %29 = arith.shrui %27, %28 : vector<8x128xi32>
    %30 = arith.xori %27, %29 : vector<8x128xi32>
    %c2146121005_i32_2 = arith.constant 2146121005 : i32
    %31 = vector.broadcast %c2146121005_i32_2 : i32 to vector<8x128xi32>
    %32 = arith.muli %30, %31 : vector<8x128xi32>
    %c15_i32_3 = arith.constant 15 : i32
    %33 = vector.broadcast %c15_i32_3 : i32 to vector<8x128xi32>
    %34 = arith.shrui %32, %33 : vector<8x128xi32>
    %35 = arith.xori %32, %34 : vector<8x128xi32>
    %c-2073254261_i32_4 = arith.constant -2073254261 : i32
    %36 = vector.broadcast %c-2073254261_i32_4 : i32 to vector<8x128xi32>
    %37 = arith.muli %35, %36 : vector<8x128xi32>
    %c16_i32_5 = arith.constant 16 : i32
    %38 = vector.broadcast %c16_i32_5 : i32 to vector<8x128xi32>
    %39 = arith.shrui %37, %38 : vector<8x128xi32>
    %40 = arith.xori %37, %39 : vector<8x128xi32>
    %c8_i32_6 = arith.constant 8 : i32
    %41 = vector.broadcast %c8_i32_6 : i32 to vector<8x128xi32>
    %42 = arith.shrui %23, %41 : vector<8x128xi32>
    %43 = arith.sitofp %42 : vector<8x128xi32> to vector<8x128xf32>
    %cst = arith.constant 5.96046448E-8 : f32
    %44 = vector.broadcast %cst : f32 to vector<8x128xf32>
    %45 = arith.mulf %43, %44 : vector<8x128xf32>
    %c8_i32_7 = arith.constant 8 : i32
    %46 = vector.broadcast %c8_i32_7 : i32 to vector<8x128xi32>
    %47 = arith.shrui %40, %46 : vector<8x128xi32>
    %48 = arith.sitofp %47 : vector<8x128xi32> to vector<8x128xf32>
    %cst_8 = arith.constant 5.96046448E-8 : f32
    %49 = vector.broadcast %cst_8 : f32 to vector<8x128xf32>
    %50 = arith.mulf %48, %49 : vector<8x128xf32>
    %cst_9 = arith.constant 1.000000e-07 : f32
    %51 = vector.broadcast %cst_9 : f32 to vector<8x128xf32>
    %52 = arith.maximumf %45, %51 : vector<8x128xf32>
    %53 = math.log %52 : vector<8x128xf32>
    %cst_10 = arith.constant -2.000000e+00 : f32
    %54 = vector.broadcast %cst_10 : f32 to vector<8x128xf32>
    %55 = arith.mulf %54, %53 : vector<8x128xf32>
    %56 = math.sqrt %55 : vector<8x128xf32>
    %cst_11 = arith.constant 6.28318548 : f32
    %57 = vector.broadcast %cst_11 : f32 to vector<8x128xf32>
    %58 = arith.mulf %57, %50 : vector<8x128xf32>
    %59 = math.cos %58 : vector<8x128xf32>
    %60 = arith.mulf %56, %59 : vector<8x128xf32>
    %61 = math.sin %58 : vector<8x128xf32>
    %62 = arith.mulf %56, %61 : vector<8x128xf32>
    %63 = tpu.concatenate %60, %62 in 0 : vector<8x128xf32>, vector<8x128xf32> -> vector<16x128xf32>
    %c0_12 = arith.constant 0 : index
    %64 = memref.load %arg2[%c0_12] : memref<1xf32, #tpu.memory_space<smem>>
    %c0_13 = arith.constant 0 : index
    %c0_14 = arith.constant 0 : index
    %65 = vector.load %arg3[%c0_13, %c0_14] : memref<16x128xf32, #tpu.memory_space<vmem>>, vector<16x128xf32>
    %66 = vector.broadcast %64 : f32 to vector<16x128xf32>
    %67 = arith.mulf %66, %63 : vector<16x128xf32>
    %68 = arith.addf %65, %67 : vector<16x128xf32>
    %c0_15 = arith.constant 0 : index
    %c0_16 = arith.constant 0 : index
    %69 = vector.load %arg4[%c0_15, %c0_16] : memref<16x128xf32, #tpu.memory_space<vmem>>, vector<16x128xf32>
    tpu.vector_store %arg4[%c0_15, %c0_16], %68 {strides = array<i32>} : memref<16x128xf32, #tpu.memory_space<vmem>>, vector<16x128xf32>,
    return
  }
  func.func @transform_0(%arg0: i32) -> i32 {
    %c0_i32 = arith.constant 0 : i32
    %c0_i32_0 = arith.constant 0 : i32
    return %c0_i32 : i32
  }
  func.func @transform_1(%arg0: i32) -> i32 {
    %c0_i32 = arith.constant 0 : i32
    %c0_i32_0 = arith.constant 0 : i32
    return %c0_i32 : i32
  }
  func.func @transform_2(%arg0: i32) -> (i32, i32) {
    %c0_i32 = arith.constant 0 : i32
    %c0_i32_0 = arith.constant 0 : i32
    return %arg0, %c0_i32 : i32, i32
  }
  func.func @transform_3(%arg0: i32) -> (i32, i32) {
    %c0_i32 = arith.constant 0 : i32
    %c0_i32_0 = arith.constant 0 : i32
    return %arg0, %c0_i32 : i32, i32
  }
}

</mosaic_0001>

<llo_original>
// kernel: gaussian_noise.1
$region0: #{gaussian_noise.1}
  #allocation0 [shape = 'u32[]', space=smem, size = 0x4, offset = 0x4, fixed_abs, tag = 'smem constant byte address 0x4 - core index']
  #allocation1 [shape = 'u32[72,128]{1,0:T(1,128)}', space=vmem, size = 0x9000, scoped, tag = 'internal scratch']
  #allocation2 [shape = 's32[1]{0:T(128)S(6)}', space=smem, size = 0x200, scoped, tag = 'scoped memory for gaussian_noise.1']
  #allocation3 [shape = 'f32[1]{0:T(128)S(6)}', space=smem, size = 0x200, scoped, tag = 'scoped memory for gaussian_noise.1']
  %s0 = inlined_call_operand.<no memory space> [shape: s32[1], index: 0, kind: input, shape index: {}]
  %s1 = inlined_call_operand.<no memory space> [shape: f32[1], index: 1, kind: input, shape index: {}]
  %s2 = inlined_call_operand.vmem [shape: f32[16,128], index: 2, kind: input, shape index: {}]
  %s3 = inlined_call_operand.vmem [shape: f32[16,128], index: 3, kind: output, shape index: {}]
  %s4 = sld [smem:[#allocation0]]
  $region22: #{gaussian_noise.1} parent=0
    _
  %s6 = ssub.s32 1, %s4
  %s7 = scalar_select 0, %s6, %s4
  %8 = sst [smem:[#allocation2]] %s0
  %9 = sst [smem:[#allocation3]] %s1
  // Predicated region
  $region2: #{gaussian_noise.1} parent=0 // pred_check
    _
  $region3: #{gaussian_noise.1} parent=0 // pred_check_branch
    %11 = sbr.rel (0) target = $region5
  $region4: #{gaussian_noise.1} parent=0 // pred_region
    _
  $region5: #{gaussian_noise.1} parent=0 // pred_fallthru
    _
  // Predicated region
  $region6: #{gaussian_noise.1} parent=0 // pred_check
    _
  $region7: #{gaussian_noise.1} parent=0 // pred_check_branch
    %13 = sbr.rel (0) target = $region9
  $region8: #{gaussian_noise.1} parent=0 // pred_region
    _
  $region9: #{gaussian_noise.1} parent=0 // pred_fallthru
    _
  // Predicated region
  $region10: #{gaussian_noise.1} parent=0 // pred_check
    _
  $region11: #{gaussian_noise.1} parent=0 // pred_check_branch
    %15 = sbr.rel (0) target = $region13
  $region12: #{gaussian_noise.1} parent=0 // pred_region
    _
  $region13: #{gaussian_noise.1} parent=0 // pred_fallthru
    _
  %s16 = sld [smem:[#allocation2]]
  %v17 = vlaneseq
  %v18 = vshrl.u32 %v17, 7
  %v19 = vlaneseq
  %v20 = vand.u32 %v19, 127
  %s21 = smul.u32 0, 8
  %v22 = vstv %s21
  %v23 = vadd.s32 %v22, %v18
  %v24 = vmul.u32 %v23, 128
  %v25 = vadd.s32 %v24, %v20
  %v26 = vstv %s16
  %v27 = vxor.u32 %v25, %v26
  %v28 = vshrl.u32 %v27, 16
  %v29 = vxor.u32 %v27, %v28
  %v30 = vmul.u32 %v29, 2146121005
  %v31 = vshrl.u32 %v30, 15
  %v32 = vxor.u32 %v30, %v31
  %v33 = vmul.u32 %v32, 2221713035
  %v34 = vshrl.u32 %v33, 16
  %v35 = vxor.u32 %v33, %v34
  %v36 = vxor.u32 %v27, 2654435769
  %v37 = vshrl.u32 %v36, 16
  %v38 = vxor.u32 %v36, %v37
  %v39 = vmul.u32 %v38, 2146121005
  %v40 = vshrl.u32 %v39, 15
  %v41 = vxor.u32 %v39, %v40
  %v42 = vmul.u32 %v41, 2221713035
  %v43 = vshrl.u32 %v42, 16
  %v44 = vxor.u32 %v42, %v43
  %v45 = vshrl.u32 %v35, 8
  %v46 = vcvt.s32.f32 %v45
  %v47 = vmul.f32 %v46, 5.9604645e-08
  %v48 = vshrl.u32 %v44, 8
  %v49 = vcvt.s32.f32 %v48
  %v50 = vmul.f32 %v49, 5.9604645e-08
  %v51 = vmax.f32 %v47, 1e-07
  %v52 = vlog2.pop %v51
  %v53 = vmul.f32 %v52, 0.6931472
  %v54 = vmul.f32 %v53, -2.0
  %v55 = vrsqrt.pop %v54
  %v56 = vmul.f32 %v55, %v54
  %v57 = vmul.f32 %v56, %v55
  %v58 = vmul.f32 0.5, %v57
  %v59 = vsub.f32 1.5, %v58
  %v60 = vmul.f32 %v55, %v59
  %v61 = vmul.f32 %v54, %v60
  %vm62 = vcmp.eq.f32.partialorder %v54, inf
  %v63 = vsel %vm62, %v54, %v61
  %vm64 = vcmp.eq.f32.partialorder %v54, 0.0
  %v65 = vand.u32 %v54, 2147483648
  %v66 = vsel %vm64, %v65, %v63
  %v67 = vmul.f32 %v50, 6.2831855
  %v68 = vand.u32 2147483647, %v67
  %vm69 = vcmp.le.f32.partialorder %v68, 0.7853982
  %vm70 = vcmp.lt.s32.totalorder %v67, 0
  %v71 = vand.u32 %v67, 2139095040
  %v72 = vshrl.u32 %v71, 23
  %v73 = vsub.s32 %v72, 127
  %v74 = vand.u32 2147483647, %v67
  %v75 = vand.u32 %v74, 8388607
  %v76 = vor.u32 %v75, 8388608
  %v77 = vsub.s32 0, %v76
  %v78 = vadd.s32 %v73, 1
  %vm79 = vcmp.gt.s32.totalorder %v78, 0
  %v80 = vsel %vm79, %v78, 0
  %v81 = vshrl.u32 %v80, 5
  %v82 = vand.u32 %v80, 31
  %v83 = vsub.s32 32, %v82
  %v84 = vshrl.u32 683565275, %v83
  %v85 = vshll.u32 683565275, %v82
  %v86 = vshrl.u32 2475754826, %v83
  %v87 = vor.u32 %v85, %v86
  %v88 = vshll.u32 2475754826, %v82
  %v89 = vshrl.u32 2131351028, %v83
  %v90 = vor.u32 %v88, %v89
  %v91 = vshll.u32 2131351028, %v82
  %v92 = vshrl.u32 2102212464, %v83
  %v93 = vor.u32 %v91, %v92
  %v94 = vshll.u32 2102212464, %v82
  %v95 = vshrl.u32 920167782, %v83
  %v96 = vor.u32 %v94, %v95
  %v97 = vshll.u32 920167782, %v82
  %v98 = vshrl.u32 1326507024, %v83
  %v99 = vor.u32 %v97, %v98
  %vm100 = vcmp.lt.s32.totalorder %v81, 1
  %vm101 = vcmp.lt.s32.totalorder %v81, 2
  %vm102 = vcmp.lt.s32.totalorder %v81, 3
  %vm103 = vcmp.lt.s32.totalorder %v81, 4
  %v104 = vsel %vm100, %v84, %v87
  %v105 = vsel %vm103, %v93, 2102212464
  %v106 = vsel %vm102, %v90, %v105
  %v107 = vsel %vm101, %v104, %v106
  %v108 = vsel %vm100, %v87, %v90
  %v109 = vsel %vm103, %v96, 920167782
  %v110 = vsel %vm102, %v93, %v109
  %v111 = vsel %vm101, %v108, %v110
  %v112 = vsel %vm100, %v90, %v93
  %v113 = vsel %vm103, %v99, 1326507024
  %v114 = vsel %vm102, %v96, %v113
  %v115 = vsel %vm101, %v112, %v114
  %v116 = vshll.u32 %v76, 8
  %v117 = vand.u32 %v116, 65535
  %v118 = vshrl.u32 %v116, 16
  %v119 = vand.u32 %v115, 65535
  %v120 = vshrl.u32 %v115, 16
  %v121 = vmul.u32 %v117, %v119
  %v122 = vmul.u32 %v117, %v120
  %v123 = vmul.u32 %v118, %v119
  %v124 = vmul.u32 %v118, %v120
  %v125 = vshll.u32 %v122, 16
  %v126 = vshrl.u32 %v122, 16
  %v127 = vshll.u32 %v123, 16
  %v128 = vshrl.u32 %v123, 16
  %vm129 = vc.u32 %v121, %v125
  %v130 = vsel %vm129, 1, 0
  %v131 = vadd.s32 %v121, %v125
  %v132 = vadd.s32 %v124, %v130
  %vm133 = vc.u32 %v131, %v127
  %v134 = vsel %vm133, 1, 0
  %v135 = vadd.s32 %v131, %v127
  %v136 = vadd.s32 %v132, %v134
  %v137 = vadd.s32 %v136, %v126
  %v138 = vadd.s32 %v137, %v128
  %v139 = vand.u32 %v116, 65535
  %v140 = vshrl.u32 %v116, 16
  %v141 = vand.u32 %v111, 65535
  %v142 = vshrl.u32 %v111, 16
  %v143 = vmul.u32 %v139, %v141
  %v144 = vmul.u32 %v139, %v142
  %v145 = vmul.u32 %v140, %v141
  %v146 = vmul.u32 %v140, %v142
  %v147 = vshll.u32 %v144, 16
  %v148 = vshrl.u32 %v144, 16
  %v149 = vshll.u32 %v145, 16
  %v150 = vshrl.u32 %v145, 16
  %vm151 = vc.u32 %v143, %v147
  %v152 = vsel %vm151, 1, 0
  %v153 = vadd.s32 %v143, %v147
  %v154 = vadd.s32 %v146, %v152
  %vm155 = vc.u32 %v153, %v149
  %v156 = vsel %vm155, 1, 0
  %v157 = vadd.s32 %v153, %v149
  %v158 = vadd.s32 %v154, %v156
  %v159 = vadd.s32 %v158, %v148
  %v160 = vadd.s32 %v159, %v150
  %v161 = vmul.u32 %v116, %v107
  %v162 = vadd.s32 %v138, %v157
  %vm163 = vc.u32 %v138, %v157
  %v164 = vadd.s32 %v160, 1
  %v165 = vsel %vm163, %v164, %v160
  %v166 = vadd.s32 %v161, %v165
  %v167 = vadd.s32 %v166, 536870912
  %v168 = vshrl.u32 %v167, 30
  %v169 = vshll.u32 %v168, 30
  %v170 = vsub.s32 %v166, %v169
  %vm171 = vcmp.lt.s32.totalorder %v170, 0
  %v172 = vsub.s32 0, %v170
  %v173 = vsel %vm171, %v172, %v170
  %v174 = vclz %v173
  %v175 = vsub.s32 %v174, 2
  %vm176 = vcmp.gt.s32.totalorder 0, %v175
  %v177 = vsel %vm176, 0, %v175
  %v178 = vsub.s32 32, %v177
  %v179 = vshll.u32 %v170, %v177
  %v180 = vshrl.u32 %v162, %v178
  %v181 = vor.u32 %v179, %v180
  %v182 = vsub.s32 4294967266, %v177
  %v183 = vadd.s32 %v182, 127
  %v184 = vshll.u32 %v183, 23
  %v185 = vor.u32 4788187, %v184
  %v186 = vand.u32 2147483647, %v185
  %v188 = vcvt.s32.f32 %v181
  %v189 = vmul.f32 %v188, %v186
  %v190 = vxor.u32 %v189, 2147483648
  %v191 = vsel %vm70, %v190, %v189
  %v192 = vsub.s32 4, %v168
  %v193 = vsel %vm70, %v192, %v168
  %v194 = vsel %vm69, %v67, %v191
  %v195 = vsel %vm69, 0, %v193
  %v196 = vmul.f32 %v194, %v194
  %v197 = vmul.f32 %v196, -0.001358992
  %v198 = vadd.f32 %v197, 0.041655596
  %v199 = vmul.f32 %v196, %v198
  %v200 = vadd.f32 %v199, -0.4999988
  %v201 = vmul.f32 %v196, %v200
  %v202 = vadd.f32 1.0, %v201
  %v203 = vmul.f32 %v194, %v194
  %v204 = vmul.f32 %v203, -0.00019511016
  %v205 = vadd.f32 %v204, 0.008332121
  %v206 = vmul.f32 %v203, %v205
  %v207 = vadd.f32 %v206, -0.16666654
  %v208 = vmul.f32 %v203, %v207
  %v209 = vadd.f32 %v208, 1.0
  %v210 = vmul.f32 %v209, %v194
  %vm211 = vweird.f32 %v67
  %v212 = vand.u32 %v195, 3
  %vm213 = vcmp.lt.s32.totalorder %v212, 2
  %vm214 = vcmp.eq.s32.totalorder %v212, 0
  %v215 = vxor.u32 %v210, 2147483648
  %v216 = vsel %vm214, %v202, %v215
  %vm217 = vcmp.eq.s32.totalorder %v212, 2
  %v218 = vxor.u32 %v202, 2147483648
  %v219 = vsel %vm217, %v218, %v210
  %v220 = vsel %vm213, %v216, %v219
  %v221 = vsel %vm211, nan, %v220
  %v222 = vmul.f32 %v66, %v221
  %v223 = vand.u32 2147483647, %v67
  %vm224 = vcmp.le.f32.partialorder %v223, 0.7853982
  %vm225 = vcmp.lt.s32.totalorder %v67, 0
  %v226 = vand.u32 %v67, 2139095040
  %v227 = vshrl.u32 %v226, 23
  %v228 = vsub.s32 %v227, 127
  %v229 = vand.u32 2147483647, %v67
  %v230 = vand.u32 %v229, 8388607
  %v231 = vor.u32 %v230, 8388608
  %v232 = vsub.s32 0, %v231
  %v233 = vadd.s32 %v228, 1
  %vm234 = vcmp.gt.s32.totalorder %v233, 0
  %v235 = vsel %vm234, %v233, 0
  %v236 = vshrl.u32 %v235, 5
  %v237 = vand.u32 %v235, 31
  %v238 = vsub.s32 32, %v237
  %v239 = vshrl.u32 683565275, %v238
  %v240 = vshll.u32 683565275, %v237
  %v241 = vshrl.u32 2475754826, %v238
  %v242 = vor.u32 %v240, %v241
  %v243 = vshll.u32 2475754826, %v237
  %v244 = vshrl.u32 2131351028, %v238
  %v245 = vor.u32 %v243, %v244
  %v246 = vshll.u32 2131351028, %v237
  %v247 = vshrl.u32 2102212464, %v238
  %v248 = vor.u32 %v246, %v247
  %v249 = vshll.u32 2102212464, %v237
  %v250 = vshrl.u32 920167782, %v238
  %v251 = vor.u32 %v249, %v250
  %v252 = vshll.u32 920167782, %v237
  %v253 = vshrl.u32 1326507024, %v238
  %v254 = vor.u32 %v252, %v253
  %vm255 = vcmp.lt.s32.totalorder %v236, 1
  %vm256 = vcmp.lt.s32.totalorder %v236, 2
  %vm257 = vcmp.lt.s32.totalorder %v236, 3
  %vm258 = vcmp.lt.s32.totalorder %v236, 4
  %v259 = vsel %vm255, %v239, %v242
  %v260 = vsel %vm258, %v248, 2102212464
  %v261 = vsel %vm257, %v245, %v260
  %v262 = vsel %vm256, %v259, %v261
  %v263 = vsel %vm255, %v242, %v245
  %v264 = vsel %vm258, %v251, 920167782
  %v265 = vsel %vm257, %v248, %v264
  %v266 = vsel %vm256, %v263, %v265
  %v267 = vsel %vm255, %v245, %v248
  %v268 = vsel %vm258, %v254, 1326507024
  %v269 = vsel %vm257, %v251, %v268
  %v270 = vsel %vm256, %v267, %v269
  %v271 = vshll.u32 %v231, 8
  %v272 = vand.u32 %v271, 65535
  %v273 = vshrl.u32 %v271, 16
  %v274 = vand.u32 %v270, 65535
  %v275 = vshrl.u32 %v270, 16
  %v276 = vmul.u32 %v272, %v274
  %v277 = vmul.u32 %v272, %v275
  %v278 = vmul.u32 %v273, %v274
  %v279 = vmul.u32 %v273, %v275
  %v280 = vshll.u32 %v277, 16
  %v281 = vshrl.u32 %v277, 16
  %v282 = vshll.u32 %v278, 16
  %v283 = vshrl.u32 %v278, 16
  %vm284 = vc.u32 %v276, %v280
  %v285 = vsel %vm284, 1, 0
  %v286 = vadd.s32 %v276, %v280
  %v287 = vadd.s32 %v279, %v285
  %vm288 = vc.u32 %v286, %v282
  %v289 = vsel %vm288, 1, 0
  %v290 = vadd.s32 %v286, %v282
  %v291 = vadd.s32 %v287, %v289
  %v292 = vadd.s32 %v291, %v281
  %v293 = vadd.s32 %v292, %v283
  %v294 = vand.u32 %v271, 65535
  %v295 = vshrl.u32 %v271, 16
  %v296 = vand.u32 %v266, 65535
  %v297 = vshrl.u32 %v266, 16
  %v298 = vmul.u32 %v294, %v296
  %v299 = vmul.u32 %v294, %v297
  %v300 = vmul.u32 %v295, %v296
  %v301 = vmul.u32 %v295, %v297
  %v302 = vshll.u32 %v299, 16
  %v303 = vshrl.u32 %v299, 16
  %v304 = vshll.u32 %v300, 16
  %v305 = vshrl.u32 %v300, 16
  %vm306 = vc.u32 %v298, %v302
  %v307 = vsel %vm306, 1, 0
  %v308 = vadd.s32 %v298, %v302
  %v309 = vadd.s32 %v301, %v307
  %vm310 = vc.u32 %v308, %v304
  %v311 = vsel %vm310, 1, 0
  %v312 = vadd.s32 %v308, %v304
  %v313 = vadd.s32 %v309, %v311
  %v314 = vadd.s32 %v313, %v303
  %v315 = vadd.s32 %v314, %v305
  %v316 = vmul.u32 %v271, %v262
  %v317 = vadd.s32 %v293, %v312
  %vm318 = vc.u32 %v293, %v312
  %v319 = vadd.s32 %v315, 1
  %v320 = vsel %vm318, %v319, %v315
  %v321 = vadd.s32 %v316, %v320
  %v322 = vadd.s32 %v321, 536870912
  %v323 = vshrl.u32 %v322, 30
  %v324 = vshll.u32 %v323, 30
  %v325 = vsub.s32 %v321, %v324
  %vm326 = vcmp.lt.s32.totalorder %v325, 0
  %v327 = vsub.s32 0, %v325
  %v328 = vsel %vm326, %v327, %v325
  %v329 = vclz %v328
  %v330 = vsub.s32 %v329, 2
  %vm331 = vcmp.gt.s32.totalorder 0, %v330
  %v332 = vsel %vm331, 0, %v330
  %v333 = vsub.s32 32, %v332
  %v334 = vshll.u32 %v325, %v332
  %v335 = vshrl.u32 %v317, %v333
  %v336 = vor.u32 %v334, %v335
  %v337 = vsub.s32 4294967266, %v332
  %v338 = vadd.s32 %v337, 127
  %v339 = vshll.u32 %v338, 23
  %v340 = vor.u32 4788187, %v339
  %v341 = vand.u32 2147483647, %v340
  %v343 = vcvt.s32.f32 %v336
  %v344 = vmul.f32 %v343, %v341
  %v345 = vxor.u32 %v344, 2147483648
  %v346 = vsel %vm225, %v345, %v344
  %v347 = vsub.s32 4, %v323
  %v348 = vsel %vm225, %v347, %v323
  %v349 = vsel %vm224, %v67, %v346
  %v350 = vsel %vm224, 0, %v348
  %v351 = vmul.f32 %v349, %v349
  %v352 = vmul.f32 %v351, -0.001358992
  %v353 = vadd.f32 %v352, 0.041655596
  %v354 = vmul.f32 %v351, %v353
  %v355 = vadd.f32 %v354, -0.4999988
  %v356 = vmul.f32 %v351, %v355
  %v357 = vadd.f32 1.0, %v356
  %v358 = vmul.f32 %v349, %v349
  %v359 = vmul.f32 %v358, -0.00019511016
  %v360 = vadd.f32 %v359, 0.008332121
  %v361 = vmul.f32 %v358, %v360
  %v362 = vadd.f32 %v361, -0.16666654
  %v363 = vmul.f32 %v358, %v362
  %v364 = vadd.f32 %v363, 1.0
  %v365 = vmul.f32 %v364, %v349
  %vm366 = vweird.f32 %v67
  %v367 = vadd.s32 %v350, 3
  %v368 = vand.u32 %v367, 3
  %vm369 = vcmp.lt.s32.totalorder %v368, 2
  %vm370 = vcmp.eq.s32.totalorder %v368, 0
  %v371 = vxor.u32 %v365, 2147483648
  %v372 = vsel %vm370, %v357, %v371
  %vm373 = vcmp.eq.s32.totalorder %v368, 2
  %v374 = vxor.u32 %v357, 2147483648
  %v375 = vsel %vm373, %v374, %v365
  %v376 = vsel %vm369, %v372, %v375
  %v377 = vsel %vm366, nan, %v376
  %v378 = vmul.f32 %v66, %v377
  %s379 = sld [smem:[#allocation3]]
  %v380 = vld [vmem:[%s2] sm:$0xff]
  %v381 = vld [vmem:[%s2 + $0x8] sm:$0xff]
  %v382 = vstv %s379
  %v383 = vmul.f32 %v382, %v222
  %v384 = vmul.f32 %v382, %v378
  %v385 = vadd.f32 %v380, %v383
  %v386 = vadd.f32 %v381, %v384
  %387 = vst [vmem:[%s3] sm:$0xff] %v385
  %388 = vst [vmem:[%s3 + $0x8] sm:$0xff] %v386
  // Predicated region
  $region14: #{gaussian_noise.1} parent=0 // pred_check
    _
  $region15: #{gaussian_noise.1} parent=0 // pred_check_branch
    %390 = sbr.rel (0) target = $region17
  $region16: #{gaussian_noise.1} parent=0 // pred_region
    _
  $region17: #{gaussian_noise.1} parent=0 // pred_fallthru
    _
  // Predicated region
  $region18: #{gaussian_noise.1} parent=0 // pred_check
    _
  $region19: #{gaussian_noise.1} parent=0 // pred_check_branch
    %392 = sbr.rel (0) target = $region21
  $region20: #{gaussian_noise.1} parent=0 // pred_region
    _
  $region21: #{gaussian_noise.1} parent=0 // pred_fallthru
    _

</llo_original>
